<compile_context>
chip_gen: v6e
topology: v6e:2x2x1
jax: 0.10.0
libtpu: 0.0.40
codegen_flags: <defaults>
</compile_context>

<pallas_src>
import jax
import jax.numpy as jnp
from jax import lax
from jax.experimental import pallas as pl
from jax.experimental.pallas import tpu as pltpu


def _round_up(x: int, m: int) -> int:
    return ((x + m - 1) // m) * m


def _vmem_capacity_bytes() -> int:
    """Generation-aware VMEM capacity (falls back to the v7x 64 MiB floor)."""
    try:
        info = pltpu.get_tpu_info()
        cap = getattr(info, "vmem_capacity_bytes", None)
        if cap:
            return int(cap)
    except Exception:
        pass
    return 64 * 1024 * 1024


def _make_mse_kernel(*, normalize: bool, need_mapping: bool, need_mask: bool,
                     n_rows: int, tile: int, bps: int, eps: float = 1e-12):
    """Build the kernel body (static config baked in via closure)."""

    def kernel(*refs):
        if need_mapping:
            s_ref, t_ref, w_ref, b_ref, o_ref, acc_ref = refs
        else:
            s_ref, t_ref, o_ref, acc_ref = refs

        c = pl.program_id(0)   # row-range split (parallel; one per TC on v7x)
        i = pl.program_id(1)   # row blocks within the split (sequential carry)

        @pl.when(i == 0)
        def _init():
            acc_ref[...] = jnp.zeros_like(acc_ref)

        # Cast to f32 inside the kernel (inputs stream in at native dtype).
        s = s_ref[...].astype(jnp.float32)

        if need_mapping:
            # teacher projection: t @ W^T + b (W stored pre-transposed (Dt, Ds)),
            # native-dtype operands on the MXU, f32 accumulation.
            t = jnp.dot(t_ref[...], w_ref[...],
                        preferred_element_type=jnp.float32)
            t = t + b_ref[...].astype(jnp.float32)
        else:
            t = t_ref[...].astype(jnp.float32)

        if normalize:
            # F.normalize: x / max(||x||, eps) == x * rsqrt(max(||x||^2, eps^2))
            eps_sq = eps * eps
            s = s * lax.rsqrt(
                jnp.maximum(jnp.sum(s * s, axis=-1, keepdims=True), eps_sq))
            t = t * lax.rsqrt(
                jnp.maximum(jnp.sum(t * t, axis=-1, keepdims=True), eps_sq))

        d = s - t
        ds_dim = d.shape[-1]

        def _accum(dd):
            sq = dd * dd
            # (tile, Ds) -> (tile//8, 8, Ds) vertical vreg sum: pure VPU adds,
            # no XLU, and the resident accumulator is only one (8, Ds) slab.
            acc_ref[...] += jnp.sum(sq.reshape(tile // 8, 8, ds_dim), axis=0)

        if need_mask:
            g = c * bps + i                       # global (unclamped) block id
            is_tail = (g + 1) * tile > n_rows     # overhanging / clamped block

            @pl.when(is_tail)
            def _tail():
                # Select (not multiply) so garbage padding rows (possibly
                # NaN/Inf after projection/normalize) cannot contaminate.
                row = g * tile + lax.broadcasted_iota(jnp.int32, (tile, 1), 0)
                _accum(jnp.where(row < n_rows, d, 0.0))

            @pl.when(jnp.logical_not(is_tail))
            def _body():
                _accum(d)
        else:
            _accum(d)

        @pl.when(i == pl.num_programs(1) - 1)
        def _finalize():
            # Single expensive reduction, once per split, in the epilogue.
            o_ref[...] = jnp.broadcast_to(jnp.sum(acc_ref[...]), (1, 128))

    return kernel


def mse_hidden_states_loss(s_hidden, t_hidden, proj_w=None, proj_b=None,
                           *, normalize=False, tile_n=None, num_splits=2):
    """Pallas implementation of MSEHiddenStatesLoss._forward_hidden.

    s_hidden: (..., Ds) student hidden states (any float dtype, e.g. bf16).
    t_hidden: (..., Dt) teacher hidden states.
    proj_w:   optional (Dt, Ds) projection weight (== torch Linear weight.T);
              if given, `need_mapping=True` semantics apply.
    proj_b:   optional (Ds,) projection bias.
    Returns a scalar float32 loss (nn.MSELoss, i.e. mean over all elements).
    """
    need_mapping = proj_w is not None
    Ds = s_hidden.shape[-1]
    Dt = t_hidden.shape[-1]
    if not need_mapping:
        assert Ds == Dt, "without mapping, student/teacher hidden dims must match"

    # Flatten to (rows, hidden) — free reshape, keep native dtype (no upcast).
    s2 = jnp.reshape(s_hidden, (-1, Ds))
    t2 = jnp.reshape(t_hidden, (-1, Dt))
    N = s2.shape[0]
    assert t2.shape[0] == N, "student/teacher must have the same number of rows"

    s_itm = jnp.dtype(s2.dtype).itemsize
    t_itm = jnp.dtype(t2.dtype).itemsize
    bytes_per_row = Ds * s_itm + Dt * t_itm

    # Row tile: >=512 by default, grown toward ~2 MiB blocks when the hidden
    # dim is small, capped at 1024, clamped to the problem and to multiples of 8.
    if tile_n is None:
        tile = max(512, (2 * 1024 * 1024) // max(bytes_per_row, 1))
        tile = min(tile, 1024)
    else:
        tile = int(tile_n)
    tile = min(tile, _round_up(N, 8))
    tile = max(8, (tile // 8) * 8)

    # Generation-aware VMEM budget (64 MiB v7x vs 128 MiB v5e/v6e).
    vmem_cap = _vmem_capacity_bytes()
    vmem_limit = min(int(vmem_cap * 0.85), 112 * 1024 * 1024)

    w_resident = (Dt * Ds * t_itm + Ds * 4) if need_mapping else 0
    # TODO(synk): if the projection weight alone exceeds the VMEM budget
    # (very large Dt*Ds), K-tile Dt with an inner pipeline instead of keeping
    # the whole W resident; not needed at these dims.

    def _est(tl):
        inputs = 2 * tl * bytes_per_row            # double-buffered input blocks
        temps = 3 * tl * max(Ds, Dt) * 4           # f32 working-set headroom
        return inputs + temps + w_resident + 8 * Ds * 4 + 2 * 128 * 4

    while tile > 8 and _est(tile) > int(0.8 * vmem_limit):
        tile = max(8, ((tile // 2) // 8) * 8)

    nb = -(-N // tile)                              # number of real row blocks
    n_split = max(1, min(int(num_splits), nb))      # 2-way split feeds both v7x TCs
    bps = -(-nb // n_split)                         # blocks per split
    # Mask whenever the last real block is partial OR a split has clamped blocks.
    need_mask = (N % tile != 0) or (nb % n_split != 0)

    kernel = _make_mse_kernel(
        normalize=normalize, need_mapping=need_mapping, need_mask=need_mask,
        n_rows=N, tile=tile, bps=bps)

    def row_map(c, i):
        # Clamp so clamped (beyond-last) blocks re-read the last real block;
        # their rows are fully masked in-kernel.
        return (jnp.minimum(c * bps + i, nb - 1), 0)

    in_specs = [
        pl.BlockSpec((tile, Ds), row_map),
        pl.BlockSpec((tile, Dt), row_map),
    ]
    args = [s2, t2]
    if need_mapping:
        # Weight in the teacher's dtype -> bf16 MXU path for bf16 activations;
        # bias kept f32 (added after the f32 accumulation, negligible size).
        w = jnp.asarray(proj_w).astype(t2.dtype)               # (Dt, Ds)
        b = jnp.reshape(jnp.asarray(proj_b), (1, Ds)).astype(jnp.float32)
        in_specs += [
            pl.BlockSpec(memory_space=pltpu.MemorySpace.VMEM),  # W resident, single copy
            pl.BlockSpec(memory_space=pltpu.MemorySpace.VMEM),  # bias resident
        ]
        args += [w, b]

    partials = pl.pallas_call(
        kernel,
        out_shape=jax.ShapeDtypeStruct((n_split, 128), jnp.float32),
        grid_spec=pltpu.PrefetchScalarGridSpec(
            num_scalar_prefetch=0,
            grid=(n_split, bps),
            in_specs=in_specs,
            # Lane-dense per-split partial sums; summed in the wrapper.
            out_specs=pl.BlockSpec((1, 128), lambda c, i: (c, 0)),
            scratch_shapes=[pltpu.VMEM((8, Ds), jnp.float32)],
        ),
        compiler_params=pltpu.CompilerParams(
            # Axis 0 (row-range split) is parallel (megacore on v7x); axis 1
            # carries the accumulator and must stay "arbitrary".
            dimension_semantics=("parallel", "arbitrary"),
            vmem_limit_bytes=vmem_limit,
        ),
    )(*args)

    return jnp.sum(partials[:, 0]) / float(N * Ds)


def _reference(s, t, w=None, b=None, normalize=False, eps=1e-12):
    """Pure-JAX reference mirroring the PyTorch forward."""
    Ds = s.shape[-1]
    Dt = t.shape[-1]
    s2 = s.reshape(-1, Ds).astype(jnp.float32)
    t2 = t.reshape(-1, Dt).astype(jnp.float32)
    if w is not None:
        t2 = t2 @ w.astype(jnp.float32) + b.astype(jnp.float32)
    if normalize:
        s2 = s2 / jnp.maximum(jnp.linalg.norm(s2, axis=-1, keepdims=True), eps)
        t2 = t2 / jnp.maximum(jnp.linalg.norm(t2, axis=-1, keepdims=True), eps)
    return jnp.mean((s2 - t2) ** 2)


if __name__ == "__main__":
    key = jax.random.PRNGKey(0)
    (k_s, k_t, k_t2, k_w, k_b, k_s3, k_t3, k_s5, k_t5) = jax.random.split(key, 9)

    batch, seq = 2, 8
    student_dim, teacher_dim = 32, 64

    # ---- case 1: no mapping, no normalize (plain flattened MSE) -------------
    s_hidden = jax.random.normal(k_s, (batch, seq, student_dim), jnp.float32)
    t_hidden_same = jax.random.normal(k_t, (batch, seq, student_dim), jnp.float32)
    loss_plain = mse_hidden_states_loss(s_hidden, t_hidden_same)
    jax.block_until_ready(loss_plain)
    ref_plain = _reference(s_hidden, t_hidden_same)
    assert jnp.allclose(loss_plain, ref_plain, rtol=1e-4, atol=1e-6), (
        loss_plain, ref_plain)

    # ---- case 2: need_mapping=True, normalize=True ---------------------------
    bound = 1.0 / (teacher_dim ** 0.5)
    proj_w = jax.random.uniform(k_w, (teacher_dim, student_dim), jnp.float32,
                                -bound, bound)  # torch weight.T
    proj_b = jax.random.uniform(k_b, (student_dim,), jnp.float32, -bound, bound)
    t_hidden = jax.random.normal(k_t2, (batch, seq, teacher_dim), jnp.float32)
    loss_map = mse_hidden_states_loss(s_hidden, t_hidden, proj_w, proj_b,
                                      normalize=True)
    jax.block_until_ready(loss_map)
    ref_map = _reference(s_hidden, t_hidden, proj_w, proj_b, normalize=True)
    assert jnp.allclose(loss_map, ref_map, rtol=1e-4, atol=1e-6), (
        loss_map, ref_map)

    # ---- case 3: mapping + normalize with a ragged row count (tail mask) ----
    seq3 = 7  # batch*seq = 14 rows -> 16-row block overhangs, tail masked
    s_hidden3 = jax.random.normal(k_s3, (batch, seq3, student_dim), jnp.float32)
    t_hidden3 = jax.random.normal(k_t3, (batch, seq3, teacher_dim), jnp.float32)
    loss_ragged = mse_hidden_states_loss(s_hidden3, t_hidden3, proj_w, proj_b,
                                         normalize=True)
    jax.block_until_ready(loss_ragged)
    ref_ragged = _reference(s_hidden3, t_hidden3, proj_w, proj_b, normalize=True)
    assert jnp.allclose(loss_ragged, ref_ragged, rtol=1e-4, atol=1e-6), (
        loss_ragged, ref_ragged)

    # ---- case 4: bf16 inputs stream through at native width -----------------
    s_bf16 = s_hidden.astype(jnp.bfloat16)
    t_bf16 = t_hidden_same.astype(jnp.bfloat16)
    loss_bf16 = mse_hidden_states_loss(s_bf16, t_bf16, normalize=True)
    jax.block_until_ready(loss_bf16)
    ref_bf16 = _reference(s_bf16, t_bf16, normalize=True)
    assert jnp.allclose(loss_bf16, ref_bf16, rtol=1e-4, atol=1e-6), (
        loss_bf16, ref_bf16)

    # ---- case 5: multi-block grid, 2-way split, clamped + partial tail ------
    seq5 = 10  # N = 20 rows, tile 8 -> 3 real blocks, 2 splits of 2 (1 clamped)
    s_hidden5 = jax.random.normal(k_s5, (batch, seq5, student_dim), jnp.float32)
    t_hidden5 = jax.random.normal(k_t5, (batch, seq5, teacher_dim), jnp.float32)
    loss_split = mse_hidden_states_loss(s_hidden5, t_hidden5, proj_w, proj_b,
                                        normalize=True, tile_n=8)
    jax.block_until_ready(loss_split)
    ref_split = _reference(s_hidden5, t_hidden5, proj_w, proj_b, normalize=True)
    assert jnp.allclose(loss_split, ref_split, rtol=1e-4, atol=1e-6), (
        loss_split, ref_split)

    # TODO(synk): tuple-of-hidden-states path (per-layer loss then mean) is plain
    # python glue over this kernel and is not exercised here.
    print("KERNEL_OK")
</pallas_src>

<mosaic_0001>
module attributes {stable_mosaic.version = 11 : i64} {
  func.func @kernel(%arg0: i32, %arg1: i32, %arg2: memref<16x32xf32, #tpu.memory_space<vmem>>, %arg3: memref<16x32xf32, #tpu.memory_space<vmem>>, %arg4: memref<1x128xf32, #tpu.memory_space<vmem>>, %arg5: memref<8x32xf32, #tpu.memory_space<vmem>>) attributes {dimension_semantics = [#tpu.dimension_semantics<parallel>, #tpu.dimension_semantics<arbitrary>], iteration_bounds = array<i64: 1, 1>, scalar_prefetch = 0 : i64, scratch_operands = 1 : i64, tpu.core_type = #tpu.core_type<tc>, window_params = [{transform_indices = @transform_0, window_bounds = array<i64: 16, 32>}, {transform_indices = @transform_1, window_bounds = array<i64: 16, 32>}, {transform_indices = @transform_2, window_bounds = array<i64: 1, 128>}]} {
    %c0_i32 = arith.constant 0 : i32
    %0 = arith.cmpi eq, %arg1, %c0_i32 : i32
    %1 = arith.extui %0 : i1 to i32
    %c0_i32_0 = arith.constant 0 : i32
    %2 = arith.cmpi ne, %1, %c0_i32_0 : i32
    scf.if %2 {
      %cst_10 = arith.constant 0.000000e+00 : f32
      %15 = vector.broadcast %cst_10 : f32 to vector<8x32xf32>
      %c0_11 = arith.constant 0 : index
      %c0_12 = arith.constant 0 : index
      %16 = vector.load %arg5[%c0_11, %c0_12] : memref<8x32xf32, #tpu.memory_space<vmem>>, vector<8x32xf32>
      tpu.vector_store %arg5[%c0_11, %c0_12], %15 {strides = array<i32>} : memref<8x32xf32, #tpu.memory_space<vmem>>, vector<8x32xf32>,
    } else {
    }
    %c0 = arith.constant 0 : index
    %c0_1 = arith.constant 0 : index
    %3 = vector.load %arg2[%c0, %c0_1] : memref<16x32xf32, #tpu.memory_space<vmem>>, vector<16x32xf32>
    %c0_2 = arith.constant 0 : index
    %c0_3 = arith.constant 0 : index
    %4 = vector.load %arg3[%c0_2, %c0_3] : memref<16x32xf32, #tpu.memory_space<vmem>>, vector<16x32xf32>
    %5 = arith.subf %3, %4 : vector<16x32xf32>
    %6 = arith.mulf %5, %5 : vector<16x32xf32>
    %c0_4 = arith.constant 0 : index
    %c0_5 = arith.constant 0 : index
    %7 = vector.load %arg5[%c0_4, %c0_5] : memref<8x32xf32, #tpu.memory_space<vmem>>, vector<8x32xf32>
    %8 = vector.shape_cast %6 : vector<16x32xf32> to vector<2x8x32xf32>
    %cst = arith.constant dense<0.000000e+00> : vector<8x32xf32>
    %9 = vector.multi_reduction <add>, %8, %cst [0] : vector<2x8x32xf32> to vector<8x32xf32>
    %10 = arith.addf %7, %9 : vector<8x32xf32>
    %c0_6 = arith.constant 0 : index
    %c0_7 = arith.constant 0 : index
    %11 = vector.load %arg5[%c0_6, %c0_7] : memref<8x32xf32, #tpu.memory_space<vmem>>, vector<8x32xf32>
    tpu.vector_store %arg5[%c0_6, %c0_7], %10 {strides = array<i32>} : memref<8x32xf32, #tpu.memory_space<vmem>>, vector<8x32xf32>,
    %c0_i32_8 = arith.constant 0 : i32
    %12 = arith.cmpi eq, %arg1, %c0_i32_8 : i32
    %13 = arith.extui %12 : i1 to i32
    %c0_i32_9 = arith.constant 0 : i32
    %14 = arith.cmpi ne, %13, %c0_i32_9 : i32
    scf.if %14 {
      %c0_10 = arith.constant 0 : index
      %c0_11 = arith.constant 0 : index
      %15 = vector.load %arg5[%c0_10, %c0_11] : memref<8x32xf32, #tpu.memory_space<vmem>>, vector<8x32xf32>
      %16 = vector.shape_cast %15 : vector<8x32xf32> to vector<1x8x32xf32>
      %cst_12 = arith.constant dense<0.000000e+00> : vector<1xf32>
      %17 = vector.multi_reduction <add>, %16, %cst_12 [1, 2] : vector<1x8x32xf32> to vector<1xf32>
      %18 = vector.shape_cast %17 : vector<1xf32> to vector<1x1x1xf32>
      %19 = vector.extract %18[0, 0, 0] : f32 from vector<1x1x1xf32>
      %20 = vector.broadcast %19 : f32 to vector<1x128xf32>
      %c0_13 = arith.constant 0 : index
      %c0_14 = arith.constant 0 : index
      %21 = vector.load %arg4[%c0_13, %c0_14] : memref<1x128xf32, #tpu.memory_space<vmem>>, vector<1x128xf32>
      tpu.vector_store %arg4[%c0_13, %c0_14], %20 {strides = array<i32>} : memref<1x128xf32, #tpu.memory_space<vmem>>, vector<1x128xf32>,
    } else {
    }
    return
  }
  func.func @transform_0(%arg0: i32, %arg1: i32) -> (i32, i32) {
    %c1_i32 = arith.constant 1 : i32
    %0 = arith.muli %arg0, %c1_i32 : i32
    %1 = arith.addi %0, %arg1 : i32
    %c0_i32 = arith.constant 0 : i32
    %2 = arith.minsi %1, %c0_i32 : i32
    %c0_i32_0 = arith.constant 0 : i32
    %c0_i32_1 = arith.constant 0 : i32
    return %2, %c0_i32_0 : i32, i32
  }
  func.func @transform_1(%arg0: i32, %arg1: i32) -> (i32, i32) {
    %c1_i32 = arith.constant 1 : i32
    %0 = arith.muli %arg0, %c1_i32 : i32
    %1 = arith.addi %0, %arg1 : i32
    %c0_i32 = arith.constant 0 : i32
    %2 = arith.minsi %1, %c0_i32 : i32
    %c0_i32_0 = arith.constant 0 : i32
    %c0_i32_1 = arith.constant 0 : i32
    return %2, %c0_i32_0 : i32, i32
  }
  func.func @transform_2(%arg0: i32, %arg1: i32) -> (i32, i32) {
    %c0_i32 = arith.constant 0 : i32
    %c0_i32_0 = arith.constant 0 : i32
    return %arg0, %c0_i32 : i32, i32
  }
}

</mosaic_0001>

<llo_original>
// kernel: tpu_custom_call.1
$region0: #{tpu_custom_call.1}
  #allocation0 [shape = 'u32[]', space=smem, size = 0x4, offset = 0x4, fixed_abs, tag = 'smem constant byte address 0x4 - core index']
  #allocation1 [shape = 'u32[144,128]{1,0:T(1,128)}', space=vmem, size = 0x12000, scoped, tag = 'internal scratch']
  #allocation2 [shape = 'f32[8,32]{1,0:T(8,128)}', space=vmem, size = 0x1000, scoped, tag = 'scratch operand']
  %s0 = inlined_call_operand.hbm [shape: f32[16,32], index: 0, kind: input, shape index: {}]
  %s1 = inlined_call_operand.hbm [shape: f32[16,32], index: 1, kind: input, shape index: {}]
  %s2 = inlined_call_operand.hbm [shape: f32[1,128], index: 2, kind: output, shape index: {}]
  %s3 = sld [smem:[#allocation0]]
  $region34: #{tpu_custom_call.1} parent=0
    _
  %s5 = ssub.s32 1, %s3
  %s6 = scalar_select 0, %s5, %s3
  $region1: #{tpu_custom_call.1} parent=0
    #allocation3 [shape = 'u8[8192]{0}', space=vmem, size = 0x2000, scoped, tag = 'input window, operand 0, single buffered']
    #allocation4 [shape = 's32[1]{0}', space=sflag, size = 0x4, scoped, tag = 'scoped memory for tpu_custom_call.1']
    #allocation5 [shape = 's32[1]{0}', space=sflag, size = 0x4, scoped, tag = 'scoped memory for tpu_custom_call.1']
    #allocation6 [shape = 'u8[8192]{0}', space=vmem, size = 0x2000, scoped, tag = 'input window, operand 1, single buffered']
    #allocation7 [shape = 's32[1]{0}', space=sflag, size = 0x4, scoped, tag = 'scoped memory for tpu_custom_call.1']
    #allocation8 [shape = 'u8[512]{0}', space=vmem, size = 0x400, scoped, tag = 'output window, operand 0, single buffered']
    %7 = vsyncpa [#allocation4], 0
    %8 = vsyncpa [#allocation7], 0
    %9 = vsyncpa [#allocation5], 0
    // Predicated region
    $region2: #{tpu_custom_call.1} parent=1 // pred_check
      _
    $region3: #{tpu_custom_call.1} parent=1 // pred_check_branch
      %11 = sbr.rel (0) target = $region5
    $region4: #{tpu_custom_call.1} parent=1 // pred_region
      %s12 = sadd.s32 0, 0
      %p13 = scmp.lt.s32.totalorder %s12, 0
      %s14 = scalar_select %p13, %s12, 0
      %s15 = smul.u32 2, %s14
      %s17 = ssub.s32 256, 256
      %18 = vsyncadd [#allocation4], %s17
      %s19 = smul.addr %s15, 128
      %s20 = scalar_lea.hbm %s0, %s19
      %s21 = sshll.u32 [#allocation3], 4
      %s22 = int_to_ptr.vmem [resolvable:$true] %s21
      %27 = dma.hbm_to_vmem [thread:$0]  %s20, 256, %s22, [#allocation4], 128, 128, 8
    $region5: #{tpu_custom_call.1} parent=1 // pred_fallthru
      _
    // Predicated region
    $region6: #{tpu_custom_call.1} parent=1 // pred_check
      _
    $region7: #{tpu_custom_call.1} parent=1 // pred_check_branch
      %29 = sbr.rel (0) target = $region9
    $region8: #{tpu_custom_call.1} parent=1 // pred_region
      %s30 = sadd.s32 0, 0
      %p31 = scmp.lt.s32.totalorder %s30, 0
      %s32 = scalar_select %p31, %s30, 0
      %s33 = smul.u32 2, %s32
      %s35 = ssub.s32 256, 256
      %36 = vsyncadd [#allocation7], %s35
      %s37 = smul.addr %s33, 128
      %s38 = scalar_lea.hbm %s1, %s37
      %s39 = sshll.u32 [#allocation6], 4
      %s40 = int_to_ptr.vmem [resolvable:$true] %s39
      %45 = dma.hbm_to_vmem [thread:$0]  %s38, 256, %s40, [#allocation7], 128, 128, 8
    $region9: #{tpu_custom_call.1} parent=1 // pred_fallthru
      _
    // Predicated region
    $region10: #{tpu_custom_call.1} parent=1 // pred_check
      _
    $region11: #{tpu_custom_call.1} parent=1 // pred_check_branch
      %47 = sbr.rel (0) target = $region13
    $region12: #{tpu_custom_call.1} parent=1 // pred_region
      %48 = dma.done [#allocation4], 256
    $region13: #{tpu_custom_call.1} parent=1 // pred_fallthru
      _
    // Predicated region
    $region14: #{tpu_custom_call.1} parent=1 // pred_check
      _
    $region15: #{tpu_custom_call.1} parent=1 // pred_check_branch
      %50 = sbr.rel (0) target = $region17
    $region16: #{tpu_custom_call.1} parent=1 // pred_region
      %51 = dma.done [#allocation7], 256
    $region17: #{tpu_custom_call.1} parent=1 // pred_fallthru
      _
    %s52 = sadd.s32 0, 0
    %p53 = scmp.lt.s32.totalorder %s52, 0
    %s54 = scalar_select %p53, %s52, 0
    %s55 = smul.u32 2, %s54
    %s56 = sadd.s32 0, 0
    %p57 = scmp.lt.s32.totalorder %s56, 0
    %s58 = scalar_select %p57, %s56, 0
    %s59 = smul.u32 2, %s58
    %p60 = scmp.eq.s32.totalorder 0, 0
    // Predicated region
    $region18: #{tpu_custom_call.1} parent=1 // pred_check
      %p61 = pneg %p60
    $region19: #{tpu_custom_call.1} parent=1 // pred_check_branch
      %63 = sbr.rel (%p61) target = $region21
    $region20: #{tpu_custom_call.1} parent=1 // pred_region
      %vm64 = vcmask 261120
      %65 = vst.msk [vmem:[#allocation2] sm:$0xff] %vm64, 0.0
    $region21: #{tpu_custom_call.1} parent=1 // pred_fallthru
      _
    %v66 = vld [vmem:[#allocation3] sm:$0xff]
    %v67 = vld [vmem:[#allocation3 + $0x8] sm:$0xff]
    %v68 = vld [vmem:[#allocation6] sm:$0xff]
    %v69 = vld [vmem:[#allocation6 + $0x8] sm:$0xff]
    %v70 = vsub.f32 %v66, %v68
    %v71 = vsub.f32 %v67, %v69
    %v72 = vmul.f32 %v70, %v70
    %v73 = vmul.f32 %v71, %v71
    %v74 = vld [vmem:[#allocation2] sm:$0xff]
    %vm75 = vcmask 261120
    %v76 = vsel %vm75, %v72, 0.0
    %v77 = vsel %vm75, %v73, 0.0
    %v78 = vadd.f32 %v76, %v77
    %v79 = vadd.f32 %v74, %v78
    %80 = vst.msk [vmem:[#allocation2] sm:$0xff] %vm75, %v79
    // Predicated region
    $region22: #{tpu_custom_call.1} parent=1 // pred_check
      %p81 = pneg %p60
    $region23: #{tpu_custom_call.1} parent=1 // pred_check_branch
      %83 = sbr.rel (%p81) target = $region25
    $region24: #{tpu_custom_call.1} parent=1 // pred_region
      %v84 = vld [vmem:[#allocation2] sm:$0xff]
      %v85 = vsel %vm75, %v84, 0.0
      %86 = vadd.xlane.f32.xlu0 %v85
      %v87 = vpop.xlane.xlu0 %86
      %v88 = vrot.slane %v87, 4
      %v89 = vadd.f32 %v87, %v88
      %v90 = vrot.slane %v89, 2
      %v91 = vadd.f32 %v89, %v90
      %v92 = vrot.slane %v91, 1
      %v93 = vadd.f32 %v91, %v92
      %s94 = vtos %v93
      %v95 = vstv %s94
      %96 = vst [vmem:[#allocation8] sm:$0x1] %v95
    $region25: #{tpu_custom_call.1} parent=1 // pred_fallthru
      _
    // Predicated region
    $region26: #{tpu_custom_call.1} parent=1 // pred_check
      _
    $region27: #{tpu_custom_call.1} parent=1 // pred_check_branch
      %98 = sbr.rel (0) target = $region29
    $region28: #{tpu_custom_call.1} parent=1 // pred_region
      %s100 = ssub.s32 16, 16
      %101 = vsyncadd [#allocation5], %s100
      %s103 = sshll.u32 [#allocation8], 4
      %s104 = int_to_ptr.vmem [resolvable:$true] %s103
      %106 = dma.vmem_to_hbm [thread:$0]  %s104, 16, %s2, [#allocation5]
    $region29: #{tpu_custom_call.1} parent=1 // pred_fallthru
      _
    // Predicated region
    $region30: #{tpu_custom_call.1} parent=1 // pred_check
      _
    $region31: #{tpu_custom_call.1} parent=1 // pred_check_branch
      %108 = sbr.rel (0) target = $region33
    $region32: #{tpu_custom_call.1} parent=1 // pred_region
      %109 = dma.done [#allocation5], 16
    $region33: #{tpu_custom_call.1} parent=1 // pred_fallthru
      _
    %110 = vsyncpa [#allocation4], 1
    %111 = vsyncpa [#allocation7], 1
    %112 = vsyncpa [#allocation5], 1

</llo_original>
